<compile_context>
chip_gen: v6e
topology: v6e:2x2x1
jax: 0.10.0
libtpu: 0.0.40
codegen_flags: <defaults>
</compile_context>

<pallas_src>
import functools
import math

import jax
import jax.numpy as jnp
from jax.experimental import pallas as pl
from jax.experimental.pallas import tpu as pltpu


class SequenceTooLongError(Exception):
    pass


def _round_up(x: int, m: int) -> int:
    return ((x + m - 1) // m) * m


def _make_pe_table(max_len: int, dim: int) -> jnp.ndarray:
    """Deterministic sinusoidal PE table, identical to the PyTorch __init__."""
    if dim % 2 != 0:
        raise ValueError(f"Cannot use sin/cos positional encoding with odd dim (got dim={dim})")
    position = jnp.arange(0, max_len, dtype=jnp.float32)[:, None]            # (L, 1)
    div_term = jnp.exp(
        jnp.arange(0, dim, 2, dtype=jnp.float32) * -(math.log(10000.0) / dim)
    )                                                                         # (D/2,)
    angles = position * div_term                                              # (L, D/2)
    pe = jnp.stack([jnp.sin(angles), jnp.cos(angles)], axis=-1)               # (L, D/2, 2)
    return pe.reshape(max_len, dim)                                           # (L, D)


def _pos_enc_kernel(emb_ref, pe_ref, out_ref, *, scale):
    # emb_ref / out_ref: (ts, tb, D) VMEM tiles; pe_ref: (ts, D).
    # The batch-axis broadcast of PE is VPU filler under the DMA (mem-bound kernel).
    out_ref[...] = (emb_ref[...] * scale + pe_ref[...][:, None, :]).astype(out_ref.dtype)


def _vmem_capacity_bytes() -> int:
    try:
        return int(pltpu.get_tpu_info().vmem_capacity_bytes)   # 128 MiB v5e/v6e, 64 MiB v7x
    except Exception:
        return 64 * 1024 * 1024                                # conservative fallback (v7x)


def _choose_tiles(seq_len, batch, dim, itemsize, budget_bytes):
    """Pick (seq_tile, batch_tile) so the pipelined VMEM footprint fits `budget_bytes`."""
    sub = {1: 32, 2: 16}.get(itemsize, 8)       # dtype-aware sublane alignment
    lane_dim = _round_up(dim, 128)              # lane padding in VMEM

    def pipelined_bytes(ts, tb):
        tb_pad = _round_up(tb, sub)             # sublane padding when tb < sub
        # emb-in + out blocks (ts, tb, D) and pe block (ts, D), each double-buffered.
        return 2 * ts * (2 * tb_pad + 1) * lane_dim * itemsize

    # Batch tile: keep the full batch in the block unless even a minimal seq tile
    # would blow the budget (then tile batch in sublane-aligned chunks).
    tb = batch
    min_rows = min(sub, seq_len)
    if batch > sub and pipelined_bytes(min_rows, tb) > budget_bytes:
        per_batch_row = 2 * min_rows * 2 * lane_dim * itemsize     # emb+out, double-buffered
        tb = min(batch, max(sub, (budget_bytes // per_batch_row // sub) * sub))
    n_batch = pl.cdiv(batch, tb)

    # Seq tile: largest aligned tile under budget; HBM roofline saturates well
    # before 2048 rows, so cap there.  Raggedness vs. seq_len is allowed.
    cap_rows = max(1, budget_bytes // pipelined_bytes(1, tb))
    ts = max(sub, (min(cap_rows, 2048) // sub) * sub)
    # v7x megacore: when the batch axis contributes no parallel grid points,
    # keep >=4 seq tiles so both TensorCores stay busy.
    if n_batch == 1 and seq_len > sub:
        ts = min(ts, max(sub, _round_up(pl.cdiv(seq_len, 4), sub)))
    if ts >= seq_len:
        ts = seq_len    # single full-extent block (alignment constraint waived)
    return ts, tb, pipelined_bytes(ts, tb)


class PositionalEncodingPallas:
    def __init__(self, dropout: float, dim: int, max_len: int = 5000):
        if dim % 2 != 0:
            raise ValueError(f"Cannot use sin/cos positional encoding with odd dim (got dim={dim})")
        self.dim = dim
        self.max_len = max_len
        self.dropout_p = dropout  # applied as identity (eval mode / p=0)
        self.pe = _make_pe_table(max_len, dim)  # (max_len, dim) float32

    def __call__(self, emb: jnp.ndarray, step=None) -> jnp.ndarray:
        step = 0 if step is None else step   # (do NOT use `step or 0`: breaks on tracers)
        seq_len, batch, dim = emb.shape
        assert dim == self.dim
        # Bounds check only possible for static steps; tracer steps are clamped
        # by dynamic_slice (documented limitation).
        if isinstance(step, int) and self.max_len < step + seq_len:
            raise SequenceTooLongError(
                f"Sequence is {seq_len + step} but PositionalEncoding is limited to {self.max_len}."
            )

        # Slice the relevant positions and cast to the activation dtype (wrapper glue).
        pe_slice = jax.lax.dynamic_slice(self.pe, (step, 0), (seq_len, dim)).astype(emb.dtype)

        itemsize = jnp.dtype(emb.dtype).itemsize
        cap = _vmem_capacity_bytes()
        budget = min(cap // 4, 32 * 1024 * 1024)          # pipelined-block budget
        ts, tb, pipelined = _choose_tiles(seq_len, batch, dim, itemsize, budget)
        n_seq = pl.cdiv(seq_len, ts)
        n_batch = pl.cdiv(batch, tb)
        # Only as much scoped VMEM as the blocks need (plus margin); v5e's 16 MiB
        # default would otherwise cap tile size, v7x's 64 MiB total needs headroom.
        vmem_limit = int(min(cap // 2, max(32 * 1024 * 1024, 2 * pipelined)))

        kernel = functools.partial(_pos_enc_kernel, scale=math.sqrt(self.dim))

        cost = pl.CostEstimate(
            flops=2 * seq_len * batch * dim,
            transcendentals=0,
            bytes_accessed=(2 * seq_len * batch * dim + seq_len * dim) * itemsize,
        )

        out = pl.pallas_call(
            kernel,
            out_shape=jax.ShapeDtypeStruct((seq_len, batch, dim), emb.dtype),
            grid_spec=pltpu.PrefetchScalarGridSpec(
                num_scalar_prefetch=0,
                # batch tiles innermost: the PE block index is constant across the
                # inner loop, so its DMA is skipped on revisits.
                grid=(n_seq, n_batch),
                in_specs=[
                    pl.BlockSpec((ts, tb, dim), lambda i, j: (i, j, 0)),   # emb (S,B,D)
                    pl.BlockSpec((ts, dim), lambda i, j: (i, 0)),          # pe  (S,D)
                ],
                out_specs=pl.BlockSpec((ts, tb, dim), lambda i, j: (i, j, 0)),
            ),
            compiler_params=pltpu.CompilerParams(
                dimension_semantics=("parallel", "parallel"),
                vmem_limit_bytes=vmem_limit,
            ),
            cost_estimate=cost,
        )(emb, pe_slice)

        return out


def _reference(emb, pe, step, dim):
    pe_slice = pe[step : step + emb.shape[0]].astype(emb.dtype)
    return emb * math.sqrt(dim) + pe_slice[:, None, :]


if __name__ == "__main__":
    key = jax.random.PRNGKey(0)
    seq_len, batch, dim = 8, 2, 32

    emb = jax.random.normal(key, (seq_len, batch, dim), dtype=jnp.float32)

    module = PositionalEncodingPallas(dropout=0.0, dim=dim, max_len=64)

    # step=None path
    out = jax.block_until_ready(module(emb))
    ref = _reference(emb, module.pe, 0, dim)
    assert out.shape == (seq_len, batch, dim)
    assert jnp.allclose(out, ref, atol=1e-5, rtol=1e-5)

    # stepwise / offset path
    out_step = jax.block_until_ready(module(emb, step=3))
    ref_step = _reference(emb, module.pe, 3, dim)
    assert jnp.allclose(out_step, ref_step, atol=1e-5, rtol=1e-5)

    print("KERNEL_OK")
</pallas_src>

<mosaic_0001>
module attributes {stable_mosaic.version = 11 : i64} {
  func.func @_pos_enc_kernel(%arg0: i32, %arg1: i32, %arg2: memref<8x2x32xf32, #tpu.memory_space<vmem>>, %arg3: memref<8x32xf32, #tpu.memory_space<vmem>>, %arg4: memref<8x2x32xf32, #tpu.memory_space<vmem>>) attributes {dimension_semantics = [#tpu.dimension_semantics<parallel>, #tpu.dimension_semantics<parallel>], iteration_bounds = array<i64: 1, 1>, scalar_prefetch = 0 : i64, scratch_operands = 0 : i64, tpu.core_type = #tpu.core_type<tc>, window_params = [{transform_indices = @transform_0, window_bounds = array<i64: 8, 2, 32>}, {transform_indices = @transform_1, window_bounds = array<i64: 8, 32>}, {transform_indices = @transform_2, window_bounds = array<i64: 8, 2, 32>}]} {
    %c0 = arith.constant 0 : index
    %c0_0 = arith.constant 0 : index
    %c0_1 = arith.constant 0 : index
    %0 = vector.load %arg2[%c0, %c0_0, %c0_1] : memref<8x2x32xf32, #tpu.memory_space<vmem>>, vector<8x2x32xf32>
    %cst = arith.constant 5.65685415 : f32
    %1 = vector.broadcast %cst : f32 to vector<8x2x32xf32>
    %2 = arith.mulf %0, %1 : vector<8x2x32xf32>
    %c0_2 = arith.constant 0 : index
    %c0_3 = arith.constant 0 : index
    %3 = vector.load %arg3[%c0_2, %c0_3] : memref<8x32xf32, #tpu.memory_space<vmem>>, vector<8x32xf32>
    %4 = vector.shape_cast %3 : vector<8x32xf32> to vector<8x1x32xf32>
    %5 = vector.broadcast %4 : vector<8x1x32xf32> to vector<8x2x32xf32>
    %6 = arith.addf %2, %5 : vector<8x2x32xf32>
    %c0_4 = arith.constant 0 : index
    %c0_5 = arith.constant 0 : index
    %c0_6 = arith.constant 0 : index
    %7 = vector.load %arg4[%c0_4, %c0_5, %c0_6] : memref<8x2x32xf32, #tpu.memory_space<vmem>>, vector<8x2x32xf32>
    tpu.vector_store %arg4[%c0_4, %c0_5, %c0_6], %6 {strides = array<i32>} : memref<8x2x32xf32, #tpu.memory_space<vmem>>, vector<8x2x32xf32>,
    return
  }
  func.func @transform_0(%arg0: i32, %arg1: i32) -> (i32, i32, i32) {
    %c0_i32 = arith.constant 0 : i32
    %c0_i32_0 = arith.constant 0 : i32
    return %arg0, %arg1, %c0_i32 : i32, i32, i32
  }
  func.func @transform_1(%arg0: i32, %arg1: i32) -> (i32, i32) {
    %c0_i32 = arith.constant 0 : i32
    %c0_i32_0 = arith.constant 0 : i32
    return %arg0, %c0_i32 : i32, i32
  }
  func.func @transform_2(%arg0: i32, %arg1: i32) -> (i32, i32, i32) {
    %c0_i32 = arith.constant 0 : i32
    %c0_i32_0 = arith.constant 0 : i32
    return %arg0, %arg1, %c0_i32 : i32, i32, i32
  }
}

</mosaic_0001>

<llo_original>
// kernel: tpu_custom_call.1
$region0: #{tpu_custom_call.1}
  #allocation0 [shape = 'u32[]', space=smem, size = 0x4, offset = 0x4, fixed_abs, tag = 'smem constant byte address 0x4 - core index']
  #allocation1 [shape = 'u32[144,128]{1,0:T(1,128)}', space=vmem, size = 0x12000, scoped, tag = 'internal scratch']
  %s0 = inlined_call_operand.hbm [shape: f32[8,2,32], index: 0, kind: input, shape index: {}]
  %s1 = inlined_call_operand.hbm [shape: f32[8,32], index: 1, kind: input, shape index: {}]
  %s2 = inlined_call_operand.hbm [shape: f32[8,2,32], index: 2, kind: output, shape index: {}]
  %s3 = sld [smem:[#allocation0]]
  $region26: #{tpu_custom_call.1} parent=0
    _
  %s5 = ssub.s32 1, %s3
  %s6 = scalar_select 0, %s5, %s3
  $region1: #{tpu_custom_call.1} parent=0
    #allocation2 [shape = 'u8[8192]{0}', space=vmem, size = 0x2000, scoped, tag = 'input window, operand 0, single buffered']
    #allocation3 [shape = 's32[1]{0}', space=sflag, size = 0x4, scoped, tag = 'scoped memory for tpu_custom_call.1']
    #allocation4 [shape = 's32[1]{0}', space=sflag, size = 0x4, scoped, tag = 'scoped memory for tpu_custom_call.1']
    #allocation5 [shape = 'u8[4096]{0}', space=vmem, size = 0x1000, scoped, tag = 'input window, operand 1, single buffered']
    #allocation6 [shape = 's32[1]{0}', space=sflag, size = 0x4, scoped, tag = 'scoped memory for tpu_custom_call.1']
    #allocation7 [shape = 'u8[8192]{0}', space=vmem, size = 0x2000, scoped, tag = 'output window, operand 0, single buffered']
    %7 = vsyncpa [#allocation3], 0
    %8 = vsyncpa [#allocation6], 0
    %9 = vsyncpa [#allocation4], 0
    // Predicated region
    $region2: #{tpu_custom_call.1} parent=1 // pred_check
      _
    $region3: #{tpu_custom_call.1} parent=1 // pred_check_branch
      %11 = sbr.rel (0) target = $region5
    $region4: #{tpu_custom_call.1} parent=1 // pred_region
      %s13 = ssub.s32 256, 256
      %14 = vsyncadd [#allocation3], %s13
      %s15 = sshll.u32 [#allocation2], 4
      %s16 = int_to_ptr.vmem [resolvable:$true] %s15
      %21 = dma.hbm_to_vmem [thread:$0]  %s0, 256, %s16, [#allocation3], 32, 32, 2
    $region5: #{tpu_custom_call.1} parent=1 // pred_fallthru
      _
    // Predicated region
    $region6: #{tpu_custom_call.1} parent=1 // pred_check
      _
    $region7: #{tpu_custom_call.1} parent=1 // pred_check_branch
      %23 = sbr.rel (0) target = $region9
    $region8: #{tpu_custom_call.1} parent=1 // pred_region
      %s25 = ssub.s32 128, 128
      %26 = vsyncadd [#allocation6], %s25
      %s28 = sshll.u32 [#allocation5], 4
      %s29 = int_to_ptr.vmem [resolvable:$true] %s28
      %31 = dma.hbm_to_vmem [thread:$0]  %s1, 128, %s29, [#allocation6]
    $region9: #{tpu_custom_call.1} parent=1 // pred_fallthru
      _
    // Predicated region
    $region10: #{tpu_custom_call.1} parent=1 // pred_check
      _
    $region11: #{tpu_custom_call.1} parent=1 // pred_check_branch
      %33 = sbr.rel (0) target = $region13
    $region12: #{tpu_custom_call.1} parent=1 // pred_region
      %34 = dma.done [#allocation3], 256
    $region13: #{tpu_custom_call.1} parent=1 // pred_fallthru
      _
    // Predicated region
    $region14: #{tpu_custom_call.1} parent=1 // pred_check
      _
    $region15: #{tpu_custom_call.1} parent=1 // pred_check_branch
      %36 = sbr.rel (0) target = $region17
    $region16: #{tpu_custom_call.1} parent=1 // pred_region
      %37 = dma.done [#allocation6], 128
    $region17: #{tpu_custom_call.1} parent=1 // pred_fallthru
      _
    %v38 = vld [vmem:[#allocation2] sm:$0x3]
    %v39 = vld [vmem:[#allocation2 + $0x2] sm:$0x3]
    %v40 = vld [vmem:[#allocation2 + $0x4] sm:$0x3]
    %v41 = vld [vmem:[#allocation2 + $0x6] sm:$0x3]
    %v42 = vld [vmem:[#allocation2 + $0x8] sm:$0x3]
    %v43 = vld [vmem:[#allocation2 + $0xa] sm:$0x3]
    %v44 = vld [vmem:[#allocation2 + $0xc] sm:$0x3]
    %v45 = vld [vmem:[#allocation2 + $0xe] sm:$0x3]
    %v46 = vmul.f32 %v38, 5.656854
    %v47 = vmul.f32 %v39, 5.656854
    %v48 = vmul.f32 %v40, 5.656854
    %v49 = vmul.f32 %v41, 5.656854
    %v50 = vmul.f32 %v42, 5.656854
    %v51 = vmul.f32 %v43, 5.656854
    %v52 = vmul.f32 %v44, 5.656854
    %v53 = vmul.f32 %v45, 5.656854
    %v54 = vld [vmem:[#allocation5] sm:$0xff]
    %v56 = vcombine.high %v54, %v54
    %v58 = vunpack.c.l.s4 1966171168
    %v59 = vunpack.c.0.s8 %v58
    %v60 = vlaneseq
    %v61 = vshrl.u32 %v60, 7
    %v62 = vsub.s32 %v59, %v61
    %v63 = vrot.slane %v54, %v62
    %v65 = vunpack.c.l.s4 1966171168
    %v66 = vunpack.c.0.s8 %v65
    %v67 = vlaneseq
    %v68 = vshrl.u32 %v67, 7
    %v69 = vsub.s32 %v66, %v68
    %v70 = vrot.slane %v56, %v69
    %v71 = vcombine.high %v63, %v63
    %v72 = vcombine.high %v70, %v70
    %v74 = vunpack.c.l.s4 1966171168
    %v75 = vunpack.c.0.s8 %v74
    %v76 = vlaneseq
    %v77 = vshrl.u32 %v76, 7
    %v78 = vsub.s32 %v75, %v77
    %v79 = vrot.slane %v63, %v78
    %v81 = vunpack.c.l.s4 1966171168
    %v82 = vunpack.c.0.s8 %v81
    %v83 = vlaneseq
    %v84 = vshrl.u32 %v83, 7
    %v85 = vsub.s32 %v82, %v84
    %v86 = vrot.slane %v70, %v85
    %v88 = vunpack.c.l.s4 1966171168
    %v89 = vunpack.c.0.s8 %v88
    %v90 = vlaneseq
    %v91 = vshrl.u32 %v90, 7
    %v92 = vsub.s32 %v89, %v91
    %v93 = vrot.slane %v71, %v92
    %v95 = vunpack.c.l.s4 1966171168
    %v96 = vunpack.c.0.s8 %v95
    %v97 = vlaneseq
    %v98 = vshrl.u32 %v97, 7
    %v99 = vsub.s32 %v96, %v98
    %v100 = vrot.slane %v72, %v99
    %v101 = vcombine.high %v79, %v79
    %v102 = vcombine.high %v86, %v86
    %v103 = vcombine.high %v93, %v93
    %v104 = vcombine.high %v100, %v100
    %v105 = vlaneseq
    %v106 = vshrl.u32 %v105, 7
    %v107 = vsub.s32 0, %v106
    %v108 = vrot.slane %v79, %v107
    %v109 = vlaneseq
    %v110 = vshrl.u32 %v109, 7
    %v111 = vsub.s32 0, %v110
    %v112 = vrot.slane %v93, %v111
    %v113 = vlaneseq
    %v114 = vshrl.u32 %v113, 7
    %v115 = vsub.s32 0, %v114
    %v116 = vrot.slane %v101, %v115
    %v117 = vlaneseq
    %v118 = vshrl.u32 %v117, 7
    %v119 = vsub.s32 0, %v118
    %v120 = vrot.slane %v103, %v119
    %v121 = vlaneseq
    %v122 = vshrl.u32 %v121, 7
    %v123 = vsub.s32 0, %v122
    %v124 = vrot.slane %v86, %v123
    %v125 = vlaneseq
    %v126 = vshrl.u32 %v125, 7
    %v127 = vsub.s32 0, %v126
    %v128 = vrot.slane %v100, %v127
    %v129 = vlaneseq
    %v130 = vshrl.u32 %v129, 7
    %v131 = vsub.s32 0, %v130
    %v132 = vrot.slane %v102, %v131
    %v133 = vlaneseq
    %v134 = vshrl.u32 %v133, 7
    %v135 = vsub.s32 0, %v134
    %v136 = vrot.slane %v104, %v135
    %v145 = vadd.f32 %v46, %v108
    %v146 = vadd.f32 %v47, %v112
    %v147 = vadd.f32 %v48, %v116
    %v148 = vadd.f32 %v49, %v120
    %v149 = vadd.f32 %v50, %v124
    %v150 = vadd.f32 %v51, %v128
    %v151 = vadd.f32 %v52, %v132
    %v152 = vadd.f32 %v53, %v136
    %vm153 = vcmask 254976
    %154 = vst.msk [vmem:[#allocation7] sm:$0x3] %vm153, %v145
    %155 = vst.msk [vmem:[#allocation7 + $0x2] sm:$0x3] %vm153, %v146
    %156 = vst.msk [vmem:[#allocation7 + $0x4] sm:$0x3] %vm153, %v147
    %157 = vst.msk [vmem:[#allocation7 + $0x6] sm:$0x3] %vm153, %v148
    %158 = vst.msk [vmem:[#allocation7 + $0x8] sm:$0x3] %vm153, %v149
    %159 = vst.msk [vmem:[#allocation7 + $0xa] sm:$0x3] %vm153, %v150
    %160 = vst.msk [vmem:[#allocation7 + $0xc] sm:$0x3] %vm153, %v151
    %161 = vst.msk [vmem:[#allocation7 + $0xe] sm:$0x3] %vm153, %v152
    // Predicated region
    $region18: #{tpu_custom_call.1} parent=1 // pred_check
      _
    $region19: #{tpu_custom_call.1} parent=1 // pred_check_branch
      %163 = sbr.rel (0) target = $region21
    $region20: #{tpu_custom_call.1} parent=1 // pred_region
      %s165 = ssub.s32 256, 256
      %166 = vsyncadd [#allocation4], %s165
      %s167 = sshll.u32 [#allocation7], 4
      %s168 = int_to_ptr.vmem [resolvable:$true] %s167
      %173 = dma.vmem_to_hbm [thread:$0]  %s168, 256, %s2, [#allocation4], 32, 32, 2
    $region21: #{tpu_custom_call.1} parent=1 // pred_fallthru
      _
    // Predicated region
    $region22: #{tpu_custom_call.1} parent=1 // pred_check
      _
    $region23: #{tpu_custom_call.1} parent=1 // pred_check_branch
      %175 = sbr.rel (0) target = $region25
    $region24: #{tpu_custom_call.1} parent=1 // pred_region
      %176 = dma.done [#allocation4], 256
    $region25: #{tpu_custom_call.1} parent=1 // pred_fallthru
      _
    %177 = vsyncpa [#allocation3], 1
    %178 = vsyncpa [#allocation6], 1
    %179 = vsyncpa [#allocation4], 1

</llo_original>
